<compile_context>
chip_gen: v6e
topology: v6e:2x2x1
jax: 0.10.0
libtpu: 0.0.40
codegen_flags: <defaults>
</compile_context>

<pallas_src>
import jax
import jax.numpy as jnp
from jax.experimental import pallas as pl
from jax.experimental.pallas import tpu as pltpu


def _round_up(x, m):
    return ((x + m - 1) // m) * m


def _make_multi_head_kernel(num_heads, compute_dtype):
    def kernel(*refs):
        x_ref = refs[0]
        w_refs = refs[1:1 + num_heads]
        b_refs = refs[1 + num_heads:1 + 2 * num_heads]
        o_refs = refs[1 + 2 * num_heads:]

        x = x_ref[...]  # [C_in, tile_hw]: channels on sublanes, pixels on lanes
        if compute_dtype is not None and x.dtype != compute_dtype:
            # In-kernel cast: VPU work hidden under the streaming DMA; avoids a
            # separate HBM cast pass in the wrapper.
            x = x.astype(compute_dtype)

        for w_ref, b_ref, o_ref in zip(w_refs, b_refs, o_refs):
            # [C_out_k, C_in] @ [C_in, tile_hw] -> [C_out_k, tile_hw], f32 accumulate.
            acc = jnp.dot(w_ref[...], x, preferred_element_type=jnp.float32)
            o_ref[...] = (acc + b_ref[...]).astype(o_ref.dtype)

    return kernel


def _pick_tile_hw(hw, c_in, c_outs, *, in_itemsize, out_itemsize,
                  budget_bytes, target, n_batch, min_steps=4):
    """Largest HW tile (multiple of 128) that fits the VMEM budget.

    VMEM accounting uses the physical layout: lane dim = tile (multiple of 128, so
    no lane padding), sublane dims rounded up to 8, everything double-buffered by
    the BlockSpec pipeline.  Also keeps >= min_steps grid steps for megacore (v7x).
    """
    if hw <= 128:
        return hw

    def step_bytes(t):
        xb = 2 * _round_up(c_in, 8) * t * in_itemsize
        ob = 2 * sum(_round_up(co, 8) for co in c_outs) * t * out_itemsize
        return xb + ob

    cap = max(128, min((target // 128) * 128, (hw // 128) * 128))
    t = cap
    while t > 128 and step_bytes(t) > budget_bytes:
        t -= 128

    # Prefer an exact divisor of hw so there is no ragged (masked) tail block.
    td = t
    while td > 128 and hw % td != 0:
        td -= 128
    if hw % td == 0:
        t = td

    # Ensure the parallel grid has enough steps to feed both v7x TensorCores.
    while n_batch * ((hw + t - 1) // t) < min_steps and t > 128:
        nt = max(128, ((t // 2) // 128) * 128)
        if nt == t:
            break
        t = nt
    return t


def multi_head_forward(t_nchw, params, *, compute_dtype=None, out_dtype=jnp.float32,
                       max_tile_hw=8192, vmem_budget_bytes=16 * 1024 * 1024):
    """Apply every head (1x1 conv: W[C_in, C_out], b[C_out]) to t_nchw.

    Returns {name: NCHW array of dtype out_dtype}.  compute_dtype (e.g. bf16)
    affects only the matmul inputs; accumulation and bias add are f32.
    """
    n, c, h, w = t_nchw.shape
    hw = h * w
    names = list(params.keys())
    c_outs = [int(params[k][0].shape[1]) for k in names]
    num_heads = len(names)
    n_total = sum(c_outs)

    w_dtype = compute_dtype if compute_dtype is not None else t_nchw.dtype
    # Per-head transposed weights [C_out_k, C_in] (tiny, VMEM-resident) + f32 bias [C_out_k, 1].
    w_ts = [jnp.asarray(params[k][0]).T.astype(w_dtype) for k in names]
    b2s = [jnp.asarray(params[k][1]).astype(jnp.float32).reshape(-1, 1) for k in names]

    # Free reshape (no transpose, no HBM copy): channels -> sublanes, pixels -> lanes.
    x3 = t_nchw.reshape(n, c, hw)

    in_itemsize = jnp.dtype(t_nchw.dtype).itemsize
    out_itemsize = jnp.dtype(out_dtype).itemsize
    tile_hw = _pick_tile_hw(hw, c, c_outs,
                            in_itemsize=in_itemsize, out_itemsize=out_itemsize,
                            budget_bytes=vmem_budget_bytes, target=max_tile_hw,
                            n_batch=n)
    grid = (n, pl.cdiv(hw, tile_hw))

    x_spec = pl.BlockSpec((None, c, tile_hw), lambda b, j: (b, 0, j))
    w_specs = [pl.BlockSpec((co, c), lambda b, j: (0, 0)) for co in c_outs]
    b_specs = [pl.BlockSpec((co, 1), lambda b, j: (0, 0)) for co in c_outs]
    o_specs = [pl.BlockSpec((None, co, tile_hw), lambda b, j: (b, 0, j)) for co in c_outs]
    out_shapes = tuple(jax.ShapeDtypeStruct((n, co, hw), out_dtype) for co in c_outs)

    cost = pl.CostEstimate(
        flops=2 * n * hw * c * n_total,
        transcendentals=0,
        bytes_accessed=(x3.size * in_itemsize
                        + sum(wt.size * wt.dtype.itemsize for wt in w_ts)
                        + sum(b.size * 4 for b in b2s)
                        + n * hw * n_total * out_itemsize),
    )

    kernel = _make_multi_head_kernel(num_heads, compute_dtype)

    outs = pl.pallas_call(
        kernel,
        out_shape=out_shapes,
        grid_spec=pltpu.PrefetchScalarGridSpec(
            num_scalar_prefetch=0,
            grid=grid,
            in_specs=[x_spec] + w_specs + b_specs,
            out_specs=list(o_specs),
        ),
        compiler_params=pltpu.CompilerParams(
            dimension_semantics=("parallel", "parallel"),  # batch x HW tiles across TCs
            vmem_limit_bytes=32 * 1024 * 1024,             # safe on v5e/v6e/v7x
        ),
        cost_estimate=cost,
    )(x3, *w_ts, *b2s)

    # Free reshapes back to NCHW per head (no channel slicing, no transpose).
    return {name: y.reshape(n, co, h, w)
            for name, co, y in zip(names, c_outs, outs)}


def init_multi_head_params(key, c_in, head_dims):
    """Deterministic init for 1x1-conv heads: weight [C_in, C_out], bias [C_out]."""
    params = {}
    for name, c_out in head_dims.items():
        key, kw, kb = jax.random.split(key, 3)
        scale = 1.0 / jnp.sqrt(jnp.float32(c_in))
        W = jax.random.uniform(kw, (c_in, c_out), jnp.float32, -scale, scale)
        b = jax.random.uniform(kb, (c_out,), jnp.float32, -scale, scale)
        params[name] = (W, b)
    return params


def _reference_forward(t_nchw, params):
    # Plain-JAX reference (equivalent to torch 1x1 Conv2d / per-pixel Linear per head).
    out = {}
    for name, (W, b) in params.items():
        out[name] = jnp.einsum("nchw,cd->ndhw", t_nchw, W) + b[None, :, None, None]
    return out


if __name__ == "__main__":
    key = jax.random.PRNGKey(0)
    k_in, k_p = jax.random.split(key)

    # Small image-generator-ish feature map: batch=2, channels=8, spatial=16x16.
    t = jax.random.normal(k_in, (2, 8, 16, 16), jnp.float32)

    # Three output heads with different channel counts (e.g. mean / logvar / logits).
    head_dims = {"mean": 4, "logvar": 4, "logits": 8}
    params = init_multi_head_params(k_p, c_in=t.shape[1], head_dims=head_dims)

    ref = _reference_forward(t, params)

    # f32 path (strict check).  Grid here is (2 batches x 2 HW tiles) = 4 steps.
    out = multi_head_forward(t, params)
    jax.block_until_ready(out)
    for name in head_dims:
        assert out[name].shape == ref[name].shape, name
        assert out[name].dtype == jnp.float32, name
        assert jnp.allclose(out[name], ref[name], atol=1e-5, rtol=1e-5), name

    # Opt-in bf16 compute path (recommended default on v5e).  Typical relative error
    # is ~1e-2 with f32 accumulation; tolerance kept loose to avoid flakiness.
    out_bf16 = multi_head_forward(t, params, compute_dtype=jnp.bfloat16)
    jax.block_until_ready(out_bf16)
    for name in head_dims:
        assert out_bf16[name].shape == ref[name].shape, name
        assert jnp.allclose(out_bf16[name], ref[name], atol=1e-1, rtol=1e-1), name

    print("KERNEL_OK")
</pallas_src>

<mosaic_0001>
module attributes {stable_mosaic.version = 11 : i64} {
  func.func @kernel(%arg0: i32, %arg1: i32, %arg2: memref<1x8x128xf32, #tpu.memory_space<vmem>>, %arg3: memref<4x8xf32, #tpu.memory_space<vmem>>, %arg4: memref<4x8xf32, #tpu.memory_space<vmem>>, %arg5: memref<8x8xf32, #tpu.memory_space<vmem>>, %arg6: memref<4x1xf32, #tpu.memory_space<vmem>>, %arg7: memref<4x1xf32, #tpu.memory_space<vmem>>, %arg8: memref<8x1xf32, #tpu.memory_space<vmem>>, %arg9: memref<1x4x128xf32, #tpu.memory_space<vmem>>, %arg10: memref<1x4x128xf32, #tpu.memory_space<vmem>>, %arg11: memref<1x8x128xf32, #tpu.memory_space<vmem>>) attributes {dimension_semantics = [#tpu.dimension_semantics<parallel>, #tpu.dimension_semantics<parallel>], iteration_bounds = array<i64: 2, 2>, scalar_prefetch = 0 : i64, scratch_operands = 0 : i64, tpu.core_type = #tpu.core_type<tc>, window_params = [{transform_indices = @transform_0, window_bounds = array<i64: 1, 8, 128>}, {pipeline_mode = #tpu.pipeline_mode<synchronous>, transform_indices = @transform_1, window_bounds = array<i64: 4, 8>}, {pipeline_mode = #tpu.pipeline_mode<synchronous>, transform_indices = @transform_2, window_bounds = array<i64: 4, 8>}, {pipeline_mode = #tpu.pipeline_mode<synchronous>, transform_indices = @transform_3, window_bounds = array<i64: 8, 8>}, {pipeline_mode = #tpu.pipeline_mode<synchronous>, transform_indices = @transform_4, window_bounds = array<i64: 4, 1>}, {pipeline_mode = #tpu.pipeline_mode<synchronous>, transform_indices = @transform_5, window_bounds = array<i64: 4, 1>}, {pipeline_mode = #tpu.pipeline_mode<synchronous>, transform_indices = @transform_6, window_bounds = array<i64: 8, 1>}, {transform_indices = @transform_7, window_bounds = array<i64: 1, 4, 128>}, {transform_indices = @transform_8, window_bounds = array<i64: 1, 4, 128>}, {transform_indices = @transform_9, window_bounds = array<i64: 1, 8, 128>}]} {
    %c0 = arith.constant 0 : index
    %c0_0 = arith.constant 0 : index
    %c0_1 = arith.constant 0 : index
    %0 = vector.load %arg2[%c0, %c0_0, %c0_1] : memref<1x8x128xf32, #tpu.memory_space<vmem>>, vector<1x8x128xf32>
    %1 = vector.shape_cast %0 : vector<1x8x128xf32> to vector<8x128xf32>
    %c0_2 = arith.constant 0 : index
    %c0_3 = arith.constant 0 : index
    %2 = vector.load %arg3[%c0_2, %c0_3] : memref<4x8xf32, #tpu.memory_space<vmem>>, vector<4x8xf32>
    %cst = arith.constant dense<0.000000e+00> : vector<4x128xf32>
    %3 = tpu.matmul %2, %1, %cst {dimension_numbers = #tpu.dot_dimension_numbers<[1], [0], [0], [1], [0, 0, 1, 1], [], []>} : vector<4x8xf32>, vector<8x128xf32>, vector<4x128xf32> -> vector<4x128xf32>
    %c0_4 = arith.constant 0 : index
    %c0_5 = arith.constant 0 : index
    %4 = vector.load %arg6[%c0_4, %c0_5] : memref<4x1xf32, #tpu.memory_space<vmem>>, vector<4x1xf32>
    %5 = vector.broadcast %4 : vector<4x1xf32> to vector<4x128xf32>
    %6 = arith.addf %3, %5 : vector<4x128xf32>
    %c0_6 = arith.constant 0 : index
    %c0_7 = arith.constant 0 : index
    %c0_8 = arith.constant 0 : index
    %7 = vector.load %arg9[%c0_6, %c0_7, %c0_8] : memref<1x4x128xf32, #tpu.memory_space<vmem>>, vector<1x4x128xf32>
    %8 = vector.shape_cast %7 : vector<1x4x128xf32> to vector<4x128xf32>
    %9 = vector.shape_cast %6 : vector<4x128xf32> to vector<1x4x128xf32>
    tpu.vector_store %arg9[%c0_6, %c0_7, %c0_8], %9 {strides = array<i32>} : memref<1x4x128xf32, #tpu.memory_space<vmem>>, vector<1x4x128xf32>,
    %c0_9 = arith.constant 0 : index
    %c0_10 = arith.constant 0 : index
    %10 = vector.load %arg4[%c0_9, %c0_10] : memref<4x8xf32, #tpu.memory_space<vmem>>, vector<4x8xf32>
    %cst_11 = arith.constant dense<0.000000e+00> : vector<4x128xf32>
    %11 = tpu.matmul %10, %1, %cst_11 {dimension_numbers = #tpu.dot_dimension_numbers<[1], [0], [0], [1], [0, 0, 1, 1], [], []>} : vector<4x8xf32>, vector<8x128xf32>, vector<4x128xf32> -> vector<4x128xf32>
    %c0_12 = arith.constant 0 : index
    %c0_13 = arith.constant 0 : index
    %12 = vector.load %arg7[%c0_12, %c0_13] : memref<4x1xf32, #tpu.memory_space<vmem>>, vector<4x1xf32>
    %13 = vector.broadcast %12 : vector<4x1xf32> to vector<4x128xf32>
    %14 = arith.addf %11, %13 : vector<4x128xf32>
    %c0_14 = arith.constant 0 : index
    %c0_15 = arith.constant 0 : index
    %c0_16 = arith.constant 0 : index
    %15 = vector.load %arg10[%c0_14, %c0_15, %c0_16] : memref<1x4x128xf32, #tpu.memory_space<vmem>>, vector<1x4x128xf32>
    %16 = vector.shape_cast %15 : vector<1x4x128xf32> to vector<4x128xf32>
    %17 = vector.shape_cast %14 : vector<4x128xf32> to vector<1x4x128xf32>
    tpu.vector_store %arg10[%c0_14, %c0_15, %c0_16], %17 {strides = array<i32>} : memref<1x4x128xf32, #tpu.memory_space<vmem>>, vector<1x4x128xf32>,
    %c0_17 = arith.constant 0 : index
    %c0_18 = arith.constant 0 : index
    %18 = vector.load %arg5[%c0_17, %c0_18] : memref<8x8xf32, #tpu.memory_space<vmem>>, vector<8x8xf32>
    %cst_19 = arith.constant dense<0.000000e+00> : vector<8x128xf32>
    %19 = tpu.matmul %18, %1, %cst_19 {dimension_numbers = #tpu.dot_dimension_numbers<[1], [0], [0], [1], [0, 0, 1, 1], [], []>} : vector<8x8xf32>, vector<8x128xf32>, vector<8x128xf32> -> vector<8x128xf32>
    %c0_20 = arith.constant 0 : index
    %c0_21 = arith.constant 0 : index
    %20 = vector.load %arg8[%c0_20, %c0_21] : memref<8x1xf32, #tpu.memory_space<vmem>>, vector<8x1xf32>
    %21 = vector.broadcast %20 : vector<8x1xf32> to vector<8x128xf32>
    %22 = arith.addf %19, %21 : vector<8x128xf32>
    %c0_22 = arith.constant 0 : index
    %c0_23 = arith.constant 0 : index
    %c0_24 = arith.constant 0 : index
    %23 = vector.load %arg11[%c0_22, %c0_23, %c0_24] : memref<1x8x128xf32, #tpu.memory_space<vmem>>, vector<1x8x128xf32>
    %24 = vector.shape_cast %23 : vector<1x8x128xf32> to vector<8x128xf32>
    %25 = vector.shape_cast %22 : vector<8x128xf32> to vector<1x8x128xf32>
    tpu.vector_store %arg11[%c0_22, %c0_23, %c0_24], %25 {strides = array<i32>} : memref<1x8x128xf32, #tpu.memory_space<vmem>>, vector<1x8x128xf32>,
    return
  }
  func.func @transform_0(%arg0: i32, %arg1: i32) -> (i32, i32, i32) {
    %c0_i32 = arith.constant 0 : i32
    %c0_i32_0 = arith.constant 0 : i32
    return %arg0, %c0_i32, %arg1 : i32, i32, i32
  }
  func.func @transform_1(%arg0: i32, %arg1: i32) -> (i32, i32) {
    %c0_i32 = arith.constant 0 : i32
    %c0_i32_0 = arith.constant 0 : i32
    %c0_i32_1 = arith.constant 0 : i32
    return %c0_i32, %c0_i32_0 : i32, i32
  }
  func.func @transform_2(%arg0: i32, %arg1: i32) -> (i32, i32) {
    %c0_i32 = arith.constant 0 : i32
    %c0_i32_0 = arith.constant 0 : i32
    %c0_i32_1 = arith.constant 0 : i32
    return %c0_i32, %c0_i32_0 : i32, i32
  }
  func.func @transform_3(%arg0: i32, %arg1: i32) -> (i32, i32) {
    %c0_i32 = arith.constant 0 : i32
    %c0_i32_0 = arith.constant 0 : i32
    %c0_i32_1 = arith.constant 0 : i32
    return %c0_i32, %c0_i32_0 : i32, i32
  }
  func.func @transform_4(%arg0: i32, %arg1: i32) -> (i32, i32) {
    %c0_i32 = arith.constant 0 : i32
    %c0_i32_0 = arith.constant 0 : i32
    %c0_i32_1 = arith.constant 0 : i32
    return %c0_i32, %c0_i32_0 : i32, i32
  }
  func.func @transform_5(%arg0: i32, %arg1: i32) -> (i32, i32) {
    %c0_i32 = arith.constant 0 : i32
    %c0_i32_0 = arith.constant 0 : i32
    %c0_i32_1 = arith.constant 0 : i32
    return %c0_i32, %c0_i32_0 : i32, i32
  }
  func.func @transform_6(%arg0: i32, %arg1: i32) -> (i32, i32) {
    %c0_i32 = arith.constant 0 : i32
    %c0_i32_0 = arith.constant 0 : i32
    %c0_i32_1 = arith.constant 0 : i32
    return %c0_i32, %c0_i32_0 : i32, i32
  }
  func.func @transform_7(%arg0: i32, %arg1: i32) -> (i32, i32, i32) {
    %c0_i32 = arith.constant 0 : i32
    %c0_i32_0 = arith.constant 0 : i32
    return %arg0, %c0_i32, %arg1 : i32, i32, i32
  }
  func.func @transform_8(%arg0: i32, %arg1: i32) -> (i32, i32, i32) {
    %c0_i32 = arith.constant 0 : i32
    %c0_i32_0 = arith.constant 0 : i32
    return %arg0, %c0_i32, %arg1 : i32, i32, i32
  }
  func.func @transform_9(%arg0: i32, %arg1: i32) -> (i32, i32, i32) {
    %c0_i32 = arith.constant 0 : i32
    %c0_i32_0 = arith.constant 0 : i32
    return %arg0, %c0_i32, %arg1 : i32, i32, i32
  }
}

</mosaic_0001>

<llo_original>
// kernel: tpu_custom_call.1
$region0: #{tpu_custom_call.1}
  #allocation0 [shape = 'u32[]', space=smem, size = 0x4, offset = 0x4, fixed_abs, tag = 'smem constant byte address 0x4 - core index']
  #allocation1 [shape = 'u32[144,128]{1,0:T(1,128)}', space=vmem, size = 0x12000, scoped, tag = 'internal scratch']
  %s0 = inlined_call_operand.hbm [shape: f32[2,8,256], index: 0, kind: input, shape index: {}]
  %s1 = inlined_call_operand.vmem [shape: f32[4,8], index: 1, kind: input, shape index: {}]
  %s2 = inlined_call_operand.vmem [shape: f32[4,8], index: 2, kind: input, shape index: {}]
  %s3 = inlined_call_operand.vmem [shape: f32[8,8], index: 3, kind: input, shape index: {}]
  %s4 = inlined_call_operand.vmem [shape: f32[4,1], index: 4, kind: input, shape index: {}]
  %s5 = inlined_call_operand.vmem [shape: f32[4,1], index: 5, kind: input, shape index: {}]
  %s6 = inlined_call_operand.vmem [shape: f32[8,1], index: 6, kind: input, shape index: {}]
  %s7 = inlined_call_operand.hbm [shape: f32[2,4,256], index: 7, kind: output, shape index: {0}]
  %s8 = inlined_call_operand.hbm [shape: f32[2,4,256], index: 8, kind: output, shape index: {1}]
  %s9 = inlined_call_operand.hbm [shape: f32[2,8,256], index: 9, kind: output, shape index: {2}]
  %10 = xla_tuple %s7, %s8, %s9
  %s11 = sld [smem:[#allocation0]]
  $region81: #{tpu_custom_call.1} parent=0
    _
  %s13 = ssub.s32 1, %s11
  %s14 = scalar_select 0, %s13, %s11
  $region1: #{tpu_custom_call.1} parent=0
    #allocation2 [shape = 'u8[8192]{0}', space=vmem, size = 0x2000, scoped, tag = 'input window, operand 0']
    #allocation3 [shape = 's32[2]{0}', space=sflag, size = 0x8, scoped, tag = 'scoped memory for tpu_custom_call.1']
    #allocation4 [shape = 's32[2]{0}', space=sflag, size = 0x8, scoped, tag = 'scoped memory for tpu_custom_call.1']
    #allocation5 [shape = 'u8[4096]{0}', space=vmem, size = 0x1000, scoped, tag = 'output window, operand 0']
    #allocation6 [shape = 'u8[4096]{0}', space=vmem, size = 0x1000, scoped, tag = 'output window, operand 1']
    #allocation7 [shape = 's32[2]{0}', space=sflag, size = 0x8, scoped, tag = 'scoped memory for tpu_custom_call.1']
    #allocation8 [shape = 'u8[8192]{0}', space=vmem, size = 0x2000, scoped, tag = 'output window, operand 2']
    %15 = vsyncpa [#allocation3], 0
    %s16 = scalar_lea.sflag [#allocation3], 1
    %17 = vsyncpa %s16, 0
    %18 = vsyncpa [#allocation4], 0
    %s19 = scalar_lea.sflag [#allocation4], 1
    %20 = vsyncpa %s19, 0
    %21 = vsyncpa [#allocation7], 0
    %s22 = scalar_lea.sflag [#allocation7], 1
    %23 = vsyncpa %s22, 0
    loop: start=0, step=1, limit=6
    $region2: #{tpu_custom_call.1} parent=1 // loop_pre_header
      _
    $region3: #{tpu_custom_call.1} parent=1 // loop_header
      %s25 = sphi 0, %s29
      %p26 = scmp.ge.s32.totalorder %s25, 6
      %s32 = sphi 0, %s44
      %s33 = sphi 0, %s40
      %s34 = sphi 0, %s32
      %s35 = sphi 0, %s33
      %s36 = sphi 0, %s34
      %s37 = sphi 0, %s35
      %s49 = sphi 0, %s51
      %s52 = sphi 0, %s49
      %s53 = sphi 0, %s52
      %s69 = sphi 0, %s53
      %s73 = sphi 0, %s73
      %s75 = sphi 0, %s73
      %s76 = sphi 0, %s75
      %s90 = sphi 0, %s76
      %s94 = sphi 0, %s94
      %s96 = sphi 0, %s94
      %s97 = sphi 0, %s96
      %s111 = sphi 0, %s97
      %s115 = sphi 0, %s115
      %s117 = sphi 0, %s115
      %s118 = sphi 0, %s117
      %s132 = sphi 0, %s118
      %s136 = sphi 0, %s136
      %s138 = sphi 0, %s136
      %s139 = sphi 0, %s138
      %s153 = sphi 0, %s139
      %s157 = sphi 0, %s157
      %s159 = sphi 0, %s157
      %s160 = sphi 0, %s159
      %s174 = sphi 0, %s160
      %s178 = sphi 0, %s178
      %s180 = sphi 0, %s178
      %s181 = sphi 0, %s180
      %s195 = sphi 0, %s181
      %s203 = sphi 0, %s205
      %s206 = sphi 0, %s203
      %s207 = sphi 0, %s206
      %s223 = sphi 0, %s207
      %s231 = sphi 0, %s233
      %s234 = sphi 0, %s231
      %s235 = sphi 0, %s234
      %s251 = sphi 0, %s235
      %s259 = sphi 0, %s261
      %s262 = sphi 0, %s259
      %s263 = sphi 0, %s262
      %s279 = sphi 0, %s263
    $region4: #{tpu_custom_call.1} parent=1 // loop_header_branch
      %28 = sbr.rel (%p26) target = $region8
    $region5: #{tpu_custom_call.1} parent=1 // loop_body
      %s30 = ssub.s32 %s25, 1
      %s31 = ssub.s32 %s25, 2
      %s38 = sadd.s32 1, %s33
      %p39 = scmp.ge.s32.totalorder %s38, 2
      %s40 = scalar_select %p39, 0, %s38
      %s41 = sadd.s32 1, %s32
      %s42 = scalar_select %p39, %s41, %s32
      %p43 = scmp.ge.s32.totalorder %s42, 2
      %s44 = scalar_select %p43, 0, %s42
      %s45 = ssub.s32 %s32, %s44
      %s46 = ssub.s32 %s33, %s40
      %s47 = sor.u32 %s45, %s46
      %p48 = scmp.eq.s32.totalorder %s47, 0
      %s50 = sadd.s32 %s49, 1
      %s51 = scalar_select %p48, %s49, %s50
      %p54 = pneg %p48
      %p55 = scmp.eq.s32.totalorder %s25, 3
      %p56 = por %p54, %p55
      %p57 = scmp.ne.s32.totalorder %s49, %s52
      %p58 = scmp.eq.s32.totalorder %s25, 0
      %p59 = por %p57, %p58
      %p60 = scmp.ne.s32.totalorder %s49, %s52
      %p61 = scmp.eq.s32.totalorder %s30, 3
      %p62 = por %p60, %p61
      %p63 = scmp.ne.s32.totalorder %s52, %s53
      %p64 = scmp.eq.s32.totalorder %s30, 0
      %p65 = por %p63, %p64
      %p66 = scmp.ne.s32.totalorder %s52, %s53
      %p67 = scmp.eq.s32.totalorder %s31, 3
      %p68 = por %p66, %p67
      %p70 = scmp.ne.s32.totalorder %s53, %s69
      %p71 = scmp.eq.s32.totalorder %s31, 0
      %p72 = por %p70, %p71
      %s74 = sadd.s32 %s73, 1
      %p77 = scmp.eq.s32.totalorder %s25, 3
      %p78 = scmp.ne.s32.totalorder %s73, %s75
      %p79 = scmp.eq.s32.totalorder %s25, 0
      %p80 = por %p78, %p79
      %p81 = scmp.ne.s32.totalorder %s73, %s75
      %p82 = scmp.eq.s32.totalorder %s30, 3
      %p83 = por %p81, %p82
      %p84 = scmp.ne.s32.totalorder %s75, %s76
      %p85 = scmp.eq.s32.totalorder %s30, 0
      %p86 = por %p84, %p85
      %p87 = scmp.ne.s32.totalorder %s75, %s76
      %p88 = scmp.eq.s32.totalorder %s31, 3
      %p89 = por %p87, %p88
      %p91 = scmp.ne.s32.totalorder %s76, %s90
      %p92 = scmp.eq.s32.totalorder %s31, 0
      %p93 = por %p91, %p92
      %s95 = sadd.s32 %s94, 1
      %p98 = scmp.eq.s32.totalorder %s25, 3
      %p99 = scmp.ne.s32.totalorder %s94, %s96
      %p100 = scmp.eq.s32.totalorder %s25, 0
      %p101 = por %p99, %p100
      %p102 = scmp.ne.s32.totalorder %s94, %s96
      %p103 = scmp.eq.s32.totalorder %s30, 3
      %p104 = por %p102, %p103
      %p105 = scmp.ne.s32.totalorder %s96, %s97
      %p106 = scmp.eq.s32.totalorder %s30, 0
      %p107 = por %p105, %p106
      %p108 = scmp.ne.s32.totalorder %s96, %s97
      %p109 = scmp.eq.s32.totalorder %s31, 3
      %p110 = por %p108, %p109
      %p112 = scmp.ne.s32.totalorder %s97, %s111
      %p113 = scmp.eq.s32.totalorder %s31, 0
      %p114 = por %p112, %p113
      %s116 = sadd.s32 %s115, 1
      %p119 = scmp.eq.s32.totalorder %s25, 3
      %p120 = scmp.ne.s32.totalorder %s115, %s117
      %p121 = scmp.eq.s32.totalorder %s25, 0
      %p122 = por %p120, %p121
      %p123 = scmp.ne.s32.totalorder %s115, %s117
      %p124 = scmp.eq.s32.totalorder %s30, 3
      %p125 = por %p123, %p124
      %p126 = scmp.ne.s32.totalorder %s117, %s118
      %p127 = scmp.eq.s32.totalorder %s30, 0
      %p128 = por %p126, %p127
      %p129 = scmp.ne.s32.totalorder %s117, %s118
      %p130 = scmp.eq.s32.totalorder %s31, 3
      %p131 = por %p129, %p130
      %p133 = scmp.ne.s32.totalorder %s118, %s132
      %p134 = scmp.eq.s32.totalorder %s31, 0
      %p135 = por %p133, %p134
      %s137 = sadd.s32 %s136, 1
      %p140 = scmp.eq.s32.totalorder %s25, 3
      %p141 = scmp.ne.s32.totalorder %s136, %s138
      %p142 = scmp.eq.s32.totalorder %s25, 0
      %p143 = por %p141, %p142
      %p144 = scmp.ne.s32.totalorder %s136, %s138
      %p145 = scmp.eq.s32.totalorder %s30, 3
      %p146 = por %p144, %p145
      %p147 = scmp.ne.s32.totalorder %s138, %s139
      %p148 = scmp.eq.s32.totalorder %s30, 0
      %p149 = por %p147, %p148
      %p150 = scmp.ne.s32.totalorder %s138, %s139
      %p151 = scmp.eq.s32.totalorder %s31, 3
      %p152 = por %p150, %p151
      %p154 = scmp.ne.s32.totalorder %s139, %s153
      %p155 = scmp.eq.s32.totalorder %s31, 0
      %p156 = por %p154, %p155
      %s158 = sadd.s32 %s157, 1
      %p161 = scmp.eq.s32.totalorder %s25, 3
      %p162 = scmp.ne.s32.totalorder %s157, %s159
      %p163 = scmp.eq.s32.totalorder %s25, 0
      %p164 = por %p162, %p163
      %p165 = scmp.ne.s32.totalorder %s157, %s159
      %p166 = scmp.eq.s32.totalorder %s30, 3
      %p167 = por %p165, %p166
      %p168 = scmp.ne.s32.totalorder %s159, %s160
      %p169 = scmp.eq.s32.totalorder %s30, 0
      %p170 = por %p168, %p169
      %p171 = scmp.ne.s32.totalorder %s159, %s160
      %p172 = scmp.eq.s32.totalorder %s31, 3
      %p173 = por %p171, %p172
      %p175 = scmp.ne.s32.totalorder %s160, %s174
      %p176 = scmp.eq.s32.totalorder %s31, 0
      %p177 = por %p175, %p176
      %s179 = sadd.s32 %s178, 1
      %p182 = scmp.eq.s32.totalorder %s25, 3
      %p183 = scmp.ne.s32.totalorder %s178, %s180
      %p184 = scmp.eq.s32.totalorder %s25, 0
      %p185 = por %p183, %p184
      %p186 = scmp.ne.s32.totalorder %s178, %s180
      %p187 = scmp.eq.s32.totalorder %s30, 3
      %p188 = por %p186, %p187
      %p189 = scmp.ne.s32.totalorder %s180, %s181
      %p190 = scmp.eq.s32.totalorder %s30, 0
      %p191 = por %p189, %p190
      %p192 = scmp.ne.s32.totalorder %s180, %s181
      %p193 = scmp.eq.s32.totalorder %s31, 3
      %p194 = por %p192, %p193
      %p196 = scmp.ne.s32.totalorder %s181, %s195
      %p197 = scmp.eq.s32.totalorder %s31, 0
      %p198 = por %p196, %p197
      %s199 = ssub.s32 %s32, %s44
      %s200 = ssub.s32 %s33, %s40
      %s201 = sor.u32 %s199, %s200
      %p202 = scmp.eq.s32.totalorder %s201, 0
      %s204 = sadd.s32 %s203, 1
      %s205 = scalar_select %p202, %s203, %s204
      %p208 = pneg %p202
      %p209 = scmp.eq.s32.totalorder %s25, 3
      %p210 = por %p208, %p209
      %p211 = scmp.ne.s32.totalorder %s203, %s206
      %p212 = scmp.eq.s32.totalorder %s25, 0
      %p213 = por %p211, %p212
      %p214 = scmp.ne.s32.totalorder %s203, %s206
      %p215 = scmp.eq.s32.totalorder %s30, 3
      %p216 = por %p214, %p215
      %p217 = scmp.ne.s32.totalorder %s206, %s207
      %p218 = scmp.eq.s32.totalorder %s30, 0
      %p219 = por %p217, %p218
      %p220 = scmp.ne.s32.totalorder %s206, %s207
      %p221 = scmp.eq.s32.totalorder %s31, 3
      %p222 = por %p220, %p221
      %p224 = scmp.ne.s32.totalorder %s207, %s223
      %p225 = scmp.eq.s32.totalorder %s31, 0
      %p226 = por %p224, %p225
      %s227 = ssub.s32 %s32, %s44
      %s228 = ssub.s32 %s33, %s40
      %s229 = sor.u32 %s227, %s228
      %p230 = scmp.eq.s32.totalorder %s229, 0
      %s232 = sadd.s32 %s231, 1
      %s233 = scalar_select %p230, %s231, %s232
      %p236 = pneg %p230
      %p237 = scmp.eq.s32.totalorder %s25, 3
      %p238 = por %p236, %p237
      %p239 = scmp.ne.s32.totalorder %s231, %s234
      %p240 = scmp.eq.s32.totalorder %s25, 0
      %p241 = por %p239, %p240
      %p242 = scmp.ne.s32.totalorder %s231, %s234
      %p243 = scmp.eq.s32.totalorder %s30, 3
      %p244 = por %p242, %p243
      %p245 = scmp.ne.s32.totalorder %s234, %s235
      %p246 = scmp.eq.s32.totalorder %s30, 0
      %p247 = por %p245, %p246
      %p248 = scmp.ne.s32.totalorder %s234, %s235
      %p249 = scmp.eq.s32.totalorder %s31, 3
      %p250 = por %p248, %p249
      %p252 = scmp.ne.s32.totalorder %s235, %s251
      %p253 = scmp.eq.s32.totalorder %s31, 0
      %p254 = por %p252, %p253
      %s255 = ssub.s32 %s32, %s44
      %s256 = ssub.s32 %s33, %s40
      %s257 = sor.u32 %s255, %s256
      %p258 = scmp.eq.s32.totalorder %s257, 0
      %s260 = sadd.s32 %s259, 1
      %s261 = scalar_select %p258, %s259, %s260
      %p264 = pneg %p258
      %p265 = scmp.eq.s32.totalorder %s25, 3
      %p266 = por %p264, %p265
      %p267 = scmp.ne.s32.totalorder %s259, %s262
      %p268 = scmp.eq.s32.totalorder %s25, 0
      %p269 = por %p267, %p268
      %p270 = scmp.ne.s32.totalorder %s259, %s262
      %p271 = scmp.eq.s32.totalorder %s30, 3
      %p272 = por %p270, %p271
      %p273 = scmp.ne.s32.totalorder %s262, %s263
      %p274 = scmp.eq.s32.totalorder %s30, 0
      %p275 = por %p273, %p274
      %p276 = scmp.ne.s32.totalorder %s262, %s263
      %p277 = scmp.eq.s32.totalorder %s31, 3
      %p278 = por %p276, %p277
      %p280 = scmp.ne.s32.totalorder %s263, %s279
      %p281 = scmp.eq.s32.totalorder %s31, 0
      %p282 = por %p280, %p281
      %p283 = scmp.le.s32.totalorder 1, %s25
      %p284 = scmp.lt.s32.totalorder %s25, 5
      %p285 = pnand %p283, %p284
      %p286 = pneg %p285
      // Predicated region
      $region9: #{tpu_custom_call.1} parent=5 // pred_check
        _
      $region10: #{tpu_custom_call.1} parent=5 // pred_check_branch
        %288 = sbr.rel (%p285) target = $region12
      $region11: #{tpu_custom_call.1} parent=5 // pred_region
        %s289 = ssub.s32 %s25, 1
        // Predicated region
        $region13: #{tpu_custom_call.1} parent=11 // pred_check
          %p290 = pneg %p86
        $region14: #{tpu_custom_call.1} parent=11 // pred_check_branch
          %292 = sbr.rel (%p290) target = $region16
        $region15: #{tpu_custom_call.1} parent=11 // pred_region
          _
        $region16: #{tpu_custom_call.1} parent=11 // pred_fallthru
          _
        // Predicated region
        $region17: #{tpu_custom_call.1} parent=11 // pred_check
          %p293 = pneg %p107
        $region18: #{tpu_custom_call.1} parent=11 // pred_check_branch
          %295 = sbr.rel (%p293) target = $region20
        $region19: #{tpu_custom_call.1} parent=11 // pred_region
          _
        $region20: #{tpu_custom_call.1} parent=11 // pred_fallthru
          _
        // Predicated region
        $region21: #{tpu_custom_call.1} parent=11 // pred_check
          %p296 = pneg %p128
        $region22: #{tpu_custom_call.1} parent=11 // pred_check_branch
          %298 = sbr.rel (%p296) target = $region24
        $region23: #{tpu_custom_call.1} parent=11 // pred_region
          _
        $region24: #{tpu_custom_call.1} parent=11 // pred_fallthru
          _
        // Predicated region
        $region25: #{tpu_custom_call.1} parent=11 // pred_check
          %p299 = pneg %p149
        $region26: #{tpu_custom_call.1} parent=11 // pred_check_branch
          %301 = sbr.rel (%p299) target = $region28
        $region27: #{tpu_custom_call.1} parent=11 // pred_region
          _
        $region28: #{tpu_custom_call.1} parent=11 // pred_fallthru
          _
        // Predicated region
        $region29: #{tpu_custom_call.1} parent=11 // pred_check
          %p302 = pneg %p170
        $region30: #{tpu_custom_call.1} parent=11 // pred_check_branch
          %304 = sbr.rel (%p302) target = $region32
        $region31: #{tpu_custom_call.1} parent=11 // pred_region
          _
        $region32: #{tpu_custom_call.1} parent=11 // pred_fallthru
          _
        // Predicated region
        $region33: #{tpu_custom_call.1} parent=11 // pred_check
          %p305 = pneg %p191
        $region34: #{tpu_custom_call.1} parent=11 // pred_check_branch
          %307 = sbr.rel (%p305) target = $region36
        $region35: #{tpu_custom_call.1} parent=11 // pred_region
          _
        $region36: #{tpu_custom_call.1} parent=11 // pred_fallthru
          _
      $region12: #{tpu_custom_call.1} parent=5 // pred_fallthru
        _
      %p308 = scmp.lt.s32.totalorder %s25, 4
      // Predicated region
      $region37: #{tpu_custom_call.1} parent=5 // pred_check
        %p309 = pneg %p308
      $region38: #{tpu_custom_call.1} parent=5 // pred_check_branch
        %311 = sbr.rel (%p309) target = $region40
      $region39: #{tpu_custom_call.1} parent=5 // pred_region
        // Predicated region
        $region41: #{tpu_custom_call.1} parent=39 // pred_check
          %p312 = pneg %p59
        $region42: #{tpu_custom_call.1} parent=39 // pred_check_branch
          %314 = sbr.rel (%p312) target = $region44
        $region43: #{tpu_custom_call.1} parent=39 // pred_region
          %s315 = sand.u32 %s49, 1
          %s316 = scalar_lea.sflag [#allocation3], %s315
          %s317 = sand.u32 %s49, 1
          %s318 = smul.addr %s317, 8
          %s319 = scalar_lea.vmem [#allocation2], %s318
          %s321 = ssub.s32 128, 128
          %322 = vsyncadd %s316, %s321
          %s323 = smul.addr %s32, 2
          %s324 = sadd.s32 %s33, %s323
          %s325 = smul.addr %s324, 128
          %s326 = scalar_lea.hbm %s0, %s325
          %s328 = sshll.u32 %s319, 4
          %s329 = int_to_ptr.vmem [resolvable:$true] %s328
          %331 = dma.hbm_to_vmem [thread:$0]  %s326, 128, %s329, %s316
        $region44: #{tpu_custom_call.1} parent=39 // pred_fallthru
          _
      $region40: #{tpu_custom_call.1} parent=5 // pred_fallthru
        _
      %p332 = scmp.le.s32.totalorder 1, %s25
      %p333 = scmp.lt.s32.totalorder %s25, 5
      %p334 = pnand %p332, %p333
      %p335 = pneg %p334
      // Predicated region
      $region45: #{tpu_custom_call.1} parent=5 // pred_check
        _
      $region46: #{tpu_custom_call.1} parent=5 // pred_check_branch
        %337 = sbr.rel (%p334) target = $region48
      $region47: #{tpu_custom_call.1} parent=5 // pred_region
        %s338 = ssub.s32 %s25, 1
        %s339 = sand.u32 %s52, 1
        %s340 = scalar_lea.sflag [#allocation3], %s339
        %s341 = sand.u32 %s52, 1
        %s342 = smul.addr %s341, 8
        %s343 = scalar_lea.vmem [#allocation2], %s342
        // Predicated region
        $region49: #{tpu_custom_call.1} parent=47 // pred_check
          %p344 = pneg %p65
        $region50: #{tpu_custom_call.1} parent=47 // pred_check_branch
          %346 = sbr.rel (%p344) target = $region52
        $region51: #{tpu_custom_call.1} parent=47 // pred_region
          %347 = dma.done %s340, 128
        $region52: #{tpu_custom_call.1} parent=47 // pred_fallthru
          _
        %s348 = sand.u32 %s52, 1
        %s349 = scalar_lea.sflag [#allocation3], %s348
        %s350 = sand.u32 %s52, 1
        %s351 = smul.addr %s350, 8
        %s352 = scalar_lea.vmem [#allocation2], %s351
        %p353 = pneg %p65
        %p354 = pneg %p62
        %p355 = pneg %p86
        %p356 = pneg %p83
        %p357 = pneg %p107
        %p358 = pneg %p104
        %p359 = pneg %p128
        %p360 = pneg %p125
        %p361 = pneg %p149
        %p362 = pneg %p146
        %p363 = pneg %p170
        %p364 = pneg %p167
        %p365 = pneg %p191
        %p366 = pneg %p188
        %p367 = pneg %p219
        %p368 = pneg %p216
        %s369 = sand.u32 %s206, 1
        %s370 = scalar_lea.sflag [#allocation4], %s369
        %s371 = sand.u32 %s206, 1
        %s372 = smul.addr %s371, 4
        %s373 = scalar_lea.vmem [#allocation5], %s372
        %p374 = pneg %p247
        %p375 = pneg %p244
        %s376 = sand.u32 %s30, 1
        %s377 = scalar_lea.sflag [#allocation7], %s376
        %s378 = sand.u32 %s234, 1
        %s379 = smul.addr %s378, 4
        %s380 = scalar_lea.vmem [#allocation6], %s379
        %p381 = pneg %p275
        %p382 = pneg %p272
        %s383 = sand.u32 %s30, 1
        %s384 = scalar_lea.sflag [#allocation7], %s383
        %s385 = sand.u32 %s262, 1
        %s386 = smul.addr %s385, 8
        %s387 = scalar_lea.vmem [#allocation8], %s386
        %v388 = vld [vmem:[%s343] sm:$0xff]
        %v389 = vld [vmem:[%s1] sm:$0xf]
        %v390 = vld [vmem:[%s4] sm:$0xf]
        %392 = vset.pattern.permute.xlu0 0
        %393 = vperm.xlu0 %392, %v390
        %v394 = vpop.permute.xlu0 %393
        %vm396 = vcmask 64512
        %v398 = vsel %vm396, %v389, 0
        %400 = vmatprep.subr.mxu0 0.0
        %401 = vmatpush1.msra.mxu0 0.0
        %402 = vmatprep.subr.mxu0 0.0
        %403 = vmatpush1.msra.mxu0 0.0
        %404 = vmatprep.subr.mxu0 0.0
        %405 = vmatpush1.msra.mxu0 0.0
        %406 = vmatprep.subr.mxu0 0.0
        %407 = vmatpush1.msra.mxu0 0.0
        %408 = vmatprep.subr.mxu0 0.0
        %409 = vmatpush1.msra.mxu0 0.0
        %410 = vmatprep.subr.mxu0 0.0
        %411 = vmatpush1.msra.mxu0 0.0
        %412 = vmatprep.subr.mxu0 0.0
        %413 = vmatpush1.msra.mxu0 0.0
        %414 = vmatprep.subr.mxu0 0.0
        %415 = vmatpush1.msra.mxu0 0.0
        %416 = vmatprep.subr.mxu0 0.0
        %417 = vmatpush1.msra.mxu0 0.0
        %418 = vmatprep.subr.mxu0 0.0
        %419 = vmatpush1.msra.mxu0 0.0
        %420 = vmatprep.subr.mxu0 0.0
        %421 = vmatpush1.msra.mxu0 0.0
        %422 = vmatprep.subr.mxu0 0.0
        %423 = vmatpush1.msra.mxu0 0.0
        %424 = vmatprep.subr.mxu0 0.0
        %425 = vmatpush1.msra.mxu0 0.0
        %426 = vmatprep.subr.mxu0 0.0
        %427 = vmatpush1.msra.mxu0 0.0
        %428 = vmatprep.subr.mxu0 0.0
        %429 = vmatpush1.msra.mxu0 0.0
        %430 = vmatprep.subr.mxu0 0.0
        %431 = vmatpush1.msra.mxu0 %v388
        %432 = vmatprep.subr.mxu0 0.0
        %433 = vmatpush2.msra.mxu0 0.0
        %434 = vmatprep.subr.mxu0 0.0
        %435 = vmatpush2.msra.mxu0 0.0
        %436 = vmatprep.subr.mxu0 0.0
        %437 = vmatpush2.msra.mxu0 0.0
        %438 = vmatprep.subr.mxu0 0.0
        %439 = vmatpush2.msra.mxu0 0.0
        %440 = vmatprep.subr.mxu0 0.0
        %441 = vmatpush2.msra.mxu0 0.0
        %442 = vmatprep.subr.mxu0 0.0
        %443 = vmatpush2.msra.mxu0 0.0
        %444 = vmatprep.subr.mxu0 0.0
        %445 = vmatpush2.msra.mxu0 0.0
        %446 = vmatprep.subr.mxu0 0.0
        %447 = vmatpush2.msra.mxu0 0.0
        %448 = vmatprep.subr.mxu0 0.0
        %449 = vmatpush2.msra.mxu0 0.0
        %450 = vmatprep.subr.mxu0 0.0
        %451 = vmatpush2.msra.mxu0 0.0
        %452 = vmatprep.subr.mxu0 0.0
        %453 = vmatpush2.msra.mxu0 0.0
        %454 = vmatprep.subr.mxu0 0.0
        %455 = vmatpush2.msra.mxu0 0.0
        %456 = vmatprep.subr.mxu0 0.0
        %457 = vmatpush2.msra.mxu0 0.0
        %458 = vmatprep.subr.mxu0 0.0
        %459 = vmatpush2.msra.mxu0 0.0
        %460 = vmatprep.subr.mxu0 0.0
        %461 = vmatpush2.msra.mxu0 0.0
        %462 = vmatprep.subr.mxu0 0.0
        %463 = vmatpush2.msra.mxu0 0.0
        %464 = vmatprep.mubr.f32.mxu0 0.0
        %465 = vmatmul.mubr.f32.gmra.mxu0 %v398
        %v466 = vpop.f32.mrf.mxu0
        %v467 = vadd.f32 %v394, %v466
        %v468 = vpop.f32.mrf.mxu0
        %469 = vdwg.mxu0
        %470 = vst [vmem:[%s373] sm:$0xf] %v467
        %v471 = vld [vmem:[%s2] sm:$0xf]
        %v472 = vld [vmem:[%s5] sm:$0xf]
        %474 = vset.pattern.permute.xlu0 0
        %475 = vperm.xlu0 %474, %v472
        %v476 = vpop.permute.xlu0 %475
        %v479 = vsel %vm396, %v471, 0
        %481 = vmatprep.subr.mxu0 0.0
        %482 = vmatpush1.msra.mxu0 0.0
        %483 = vmatprep.subr.mxu0 0.0
        %484 = vmatpush1.msra.mxu0 0.0
        %485 = vmatprep.subr.mxu0 0.0
        %486 = vmatpush1.msra.mxu0 0.0
        %487 = vmatprep.subr.mxu0 0.0
        %488 = vmatpush1.msra.mxu0 0.0
        %489 = vmatprep.subr.mxu0 0.0
        %490 = vmatpush1.msra.mxu0 0.0
        %491 = vmatprep.subr.mxu0 0.0
        %492 = vmatpush1.msra.mxu0 0.0
        %493 = vmatprep.subr.mxu0 0.0
        %494 = vmatpush1.msra.mxu0 0.0
        %495 = vmatprep.subr.mxu0 0.0
        %496 = vmatpush1.msra.mxu0 0.0
        %497 = vmatprep.subr.mxu0 0.0
        %498 = vmatpush1.msra.mxu0 0.0
        %499 = vmatprep.subr.mxu0 0.0
        %500 = vmatpush1.msra.mxu0 0.0
        %501 = vmatprep.subr.mxu0 0.0
        %502 = vmatpush1.msra.mxu0 0.0
        %503 = vmatprep.subr.mxu0 0.0
        %504 = vmatpush1.msra.mxu0 0.0
        %505 = vmatprep.subr.mxu0 0.0
        %506 = vmatpush1.msra.mxu0 0.0
        %507 = vmatprep.subr.mxu0 0.0
        %508 = vmatpush1.msra.mxu0 0.0
        %509 = vmatprep.subr.mxu0 0.0
        %510 = vmatpush1.msra.mxu0 0.0
        %511 = vmatprep.subr.mxu0 0.0
        %512 = vmatpush1.msra.mxu0 %v388
        %513 = vmatprep.subr.mxu0 0.0
        %514 = vmatpush2.msra.mxu0 0.0
        %515 = vmatprep.subr.mxu0 0.0
        %516 = vmatpush2.msra.mxu0 0.0
        %517 = vmatprep.subr.mxu0 0.0
        %518 = vmatpush2.msra.mxu0 0.0
        %519 = vmatprep.subr.mxu0 0.0
        %520 = vmatpush2.msra.mxu0 0.0
        %521 = vmatprep.subr.mxu0 0.0
        %522 = vmatpush2.msra.mxu0 0.0
        %523 = vmatprep.subr.mxu0 0.0
        %524 = vmatpush2.msra.mxu0 0.0
        %525 = vmatprep.subr.mxu0 0.0
        %526 = vmatpush2.msra.mxu0 0.0
        %527 = vmatprep.subr.mxu0 0.0
        %528 = vmatpush2.msra.mxu0 0.0
        %529 = vmatprep.subr.mxu0 0.0
        %530 = vmatpush2.msra.mxu0 0.0
        %531 = vmatprep.subr.mxu0 0.0
        %532 = vmatpush2.msra.mxu0 0.0
        %533 = vmatprep.subr.mxu0 0.0
        %534 = vmatpush2.msra.mxu0 0.0
        %535 = vmatprep.subr.mxu0 0.0
        %536 = vmatpush2.msra.mxu0 0.0
        %537 = vmatprep.subr.mxu0 0.0
        %538 = vmatpush2.msra.mxu0 0.0
        %539 = vmatprep.subr.mxu0 0.0
        %540 = vmatpush2.msra.mxu0 0.0
        %541 = vmatprep.subr.mxu0 0.0
        %542 = vmatpush2.msra.mxu0 0.0
        %543 = vmatprep.subr.mxu0 0.0
        %544 = vmatpush2.msra.mxu0 0.0
        %545 = vmatprep.mubr.f32.mxu0 0.0
        %546 = vmatmul.mubr.f32.gmra.mxu0 %v479
        %v547 = vpop.f32.mrf.mxu0
        %v548 = vadd.f32 %v476, %v547
        %v549 = vpop.f32.mrf.mxu0
        %550 = vdwg.mxu0
        %551 = vst [vmem:[%s380] sm:$0xf] %v548
        %v552 = vld [vmem:[%s3] sm:$0xff]
        %v553 = vld [vmem:[%s6] sm:$0xff]
        %555 = vset.pattern.permute.xlu0 0
        %556 = vperm.xlu0 %555, %v553
        %v557 = vpop.permute.xlu0 %556
        %v560 = vsel %vm396, %v552, 0
        %562 = vmatprep.subr.mxu0 0.0
        %563 = vmatpush1.msra.mxu0 0.0
        %564 = vmatprep.subr.mxu0 0.0
        %565 = vmatpush1.msra.mxu0 0.0
        %566 = vmatprep.subr.mxu0 0.0
        %567 = vmatpush1.msra.mxu0 0.0
        %568 = vmatprep.subr.mxu0 0.0
        %569 = vmatpush1.msra.mxu0 0.0
        %570 = vmatprep.subr.mxu0 0.0
        %571 = vmatpush1.msra.mxu0 0.0
        %572 = vmatprep.subr.mxu0 0.0
        %573 = vmatpush1.msra.mxu0 0.0
        %574 = vmatprep.subr.mxu0 0.0
        %575 = vmatpush1.msra.mxu0 0.0
        %576 = vmatprep.subr.mxu0 0.0
        %577 = vmatpush1.msra.mxu0 0.0
        %578 = vmatprep.subr.mxu0 0.0
        %579 = vmatpush1.msra.mxu0 0.0
        %580 = vmatprep.subr.mxu0 0.0
        %581 = vmatpush1.msra.mxu0 0.0
        %582 = vmatprep.subr.mxu0 0.0
        %583 = vmatpush1.msra.mxu0 0.0
        %584 = vmatprep.subr.mxu0 0.0
        %585 = vmatpush1.msra.mxu0 0.0
        %586 = vmatprep.subr.mxu0 0.0
        %587 = vmatpush1.msra.mxu0 0.0
        %588 = vmatprep.subr.mxu0 0.0
        %589 = vmatpush1.msra.mxu0 0.0
        %590 = vmatprep.subr.mxu0 0.0
        %591 = vmatpush1.msra.mxu0 0.0
        %592 = vmatprep.subr.mxu0 0.0
        %593 = vmatpush1.msra.mxu0 %v388
        %594 = vmatprep.subr.mxu0 0.0
        %595 = vmatpush2.msra.mxu0 0.0
        %596 = vmatprep.subr.mxu0 0.0
        %597 = vmatpush2.msra.mxu0 0.0
        %598 = vmatprep.subr.mxu0 0.0
        %599 = vmatpush2.msra.mxu0 0.0
        %600 = vmatprep.subr.mxu0 0.0
        %601 = vmatpush2.msra.mxu0 0.0
        %602 = vmatprep.subr.mxu0 0.0
        %603 = vmatpush2.msra.mxu0 0.0
        %604 = vmatprep.subr.mxu0 0.0
        %605 = vmatpush2.msra.mxu0 0.0
        %606 = vmatprep.subr.mxu0 0.0
        %607 = vmatpush2.msra.mxu0 0.0
        %608 = vmatprep.subr.mxu0 0.0
        %609 = vmatpush2.msra.mxu0 0.0
        %610 = vmatprep.subr.mxu0 0.0
        %611 = vmatpush2.msra.mxu0 0.0
        %612 = vmatprep.subr.mxu0 0.0
        %613 = vmatpush2.msra.mxu0 0.0
        %614 = vmatprep.subr.mxu0 0.0
        %615 = vmatpush2.msra.mxu0 0.0
        %616 = vmatprep.subr.mxu0 0.0
        %617 = vmatpush2.msra.mxu0 0.0
        %618 = vmatprep.subr.mxu0 0.0
        %619 = vmatpush2.msra.mxu0 0.0
        %620 = vmatprep.subr.mxu0 0.0
        %621 = vmatpush2.msra.mxu0 0.0
        %622 = vmatprep.subr.mxu0 0.0
        %623 = vmatpush2.msra.mxu0 0.0
        %624 = vmatprep.subr.mxu0 0.0
        %625 = vmatpush2.msra.mxu0 0.0
        %626 = vmatprep.mubr.f32.mxu0 0.0
        %627 = vmatmul.mubr.f32.gmra.mxu0 %v560
        %v628 = vpop.f32.mrf.mxu0
        %v629 = vadd.f32 %v557, %v628
        %v630 = vpop.f32.mrf.mxu0
        %631 = vdwg.mxu0
        %632 = vst [vmem:[%s387] sm:$0xff] %v629
        %s633 = sand.u32 %s206, 1
        %s634 = scalar_lea.sflag [#allocation4], %s633
        %s635 = sand.u32 %s206, 1
        %s636 = smul.addr %s635, 4
        %s637 = scalar_lea.vmem [#allocation5], %s636
        %s638 = sand.u32 %s30, 1
        %s639 = scalar_lea.sflag [#allocation7], %s638
        %s640 = sand.u32 %s234, 1
        %s641 = smul.addr %s640, 4
        %s642 = scalar_lea.vmem [#allocation6], %s641
        %s643 = sand.u32 %s30, 1
        %s644 = scalar_lea.sflag [#allocation7], %s643
        %s645 = sand.u32 %s262, 1
        %s646 = smul.addr %s645, 8
        %s647 = scalar_lea.vmem [#allocation8], %s646
        // Predicated region
        $region53: #{tpu_custom_call.1} parent=47 // pred_check
          %p648 = pneg %p216
        $region54: #{tpu_custom_call.1} parent=47 // pred_check_branch
          %650 = sbr.rel (%p648) target = $region56
        $region55: #{tpu_custom_call.1} parent=47 // pred_region
          %s652 = ssub.s32 64, 64
          %653 = vsyncadd %s634, %s652
          %s654 = smul.addr %s34, 2
          %s655 = sadd.s32 %s35, %s654
          %s656 = smul.addr %s655, 64
          %s657 = scalar_lea.hbm %s7, %s656
          %s659 = sshll.u32 %s637, 4
          %s660 = int_to_ptr.vmem [resolvable:$true] %s659
          %662 = dma.vmem_to_hbm [thread:$0]  %s660, 64, %s657, %s634
        $region56: #{tpu_custom_call.1} parent=47 // pred_fallthru
          _
        // Predicated region
        $region57: #{tpu_custom_call.1} parent=47 // pred_check
          %p663 = pneg %p244
        $region58: #{tpu_custom_call.1} parent=47 // pred_check_branch
          %665 = sbr.rel (%p663) target = $region60
        $region59: #{tpu_custom_call.1} parent=47 // pred_region
          %s667 = ssub.s32 64, 64
          %668 = vsyncadd %s639, %s667
          %s669 = smul.addr %s34, 2
          %s670 = sadd.s32 %s35, %s669
          %s671 = smul.addr %s670, 64
          %s672 = scalar_lea.hbm %s8, %s671
          %s674 = sshll.u32 %s642, 4
          %s675 = int_to_ptr.vmem [resolvable:$true] %s674
          %677 = dma.vmem_to_hbm [thread:$0]  %s675, 64, %s672, %s639
        $region60: #{tpu_custom_call.1} parent=47 // pred_fallthru
          _
        // Predicated region
        $region61: #{tpu_custom_call.1} parent=47 // pred_check
          %p678 = pneg %p272
        $region62: #{tpu_custom_call.1} parent=47 // pred_check_branch
          %680 = sbr.rel (%p678) target = $region64
        $region63: #{tpu_custom_call.1} parent=47 // pred_region
          %s682 = ssub.s32 128, 128
          %683 = vsyncadd %s644, %s682
          %s684 = smul.addr %s34, 2
          %s685 = sadd.s32 %s35, %s684
          %s686 = smul.addr %s685, 128
          %s687 = scalar_lea.hbm %s9, %s686
          %s689 = sshll.u32 %s647, 4
          %s690 = int_to_ptr.vmem [resolvable:$true] %s689
          %692 = dma.vmem_to_hbm [thread:$0]  %s690, 128, %s687, %s644
        $region64: #{tpu_custom_call.1} parent=47 // pred_fallthru
          _
      $region48: #{tpu_custom_call.1} parent=5 // pred_fallthru
        _
      %p693 = scmp.le.s32.totalorder 2, %s25
      // Predicated region
      $region65: #{tpu_custom_call.1} parent=5 // pred_check
        %p694 = pneg %p693
      $region66: #{tpu_custom_call.1} parent=5 // pred_check_branch
        %696 = sbr.rel (%p694) target = $region68
      $region67: #{tpu_custom_call.1} parent=5 // pred_region
        %s697 = ssub.s32 %s25, 2
        // Predicated region
        $region69: #{tpu_custom_call.1} parent=67 // pred_check
          %p698 = pneg %p222
        $region70: #{tpu_custom_call.1} parent=67 // pred_check_branch
          %700 = sbr.rel (%p698) target = $region72
        $region71: #{tpu_custom_call.1} parent=67 // pred_region
          %s701 = sand.u32 %s207, 1
          %s702 = scalar_lea.sflag [#allocation4], %s701
          %s703 = sand.u32 %s207, 1
          %s704 = smul.addr %s703, 4
          %s705 = scalar_lea.vmem [#allocation5], %s704
          %706 = dma.done %s702, 64
        $region72: #{tpu_custom_call.1} parent=67 // pred_fallthru
          _
        // Predicated region
        $region73: #{tpu_custom_call.1} parent=67 // pred_check
          %p707 = pneg %p250
        $region74: #{tpu_custom_call.1} parent=67 // pred_check_branch
          %709 = sbr.rel (%p707) target = $region76
        $region75: #{tpu_custom_call.1} parent=67 // pred_region
          %s710 = sand.u32 %s31, 1
          %s711 = scalar_lea.sflag [#allocation7], %s710
          %s712 = sand.u32 %s235, 1
          %s713 = smul.addr %s712, 4
          %s714 = scalar_lea.vmem [#allocation6], %s713
          %715 = dma.done %s711, 64
        $region76: #{tpu_custom_call.1} parent=67 // pred_fallthru
          _
        // Predicated region
        $region77: #{tpu_custom_call.1} parent=67 // pred_check
          %p716 = pneg %p278
        $region78: #{tpu_custom_call.1} parent=67 // pred_check_branch
          %718 = sbr.rel (%p716) target = $region80
        $region79: #{tpu_custom_call.1} parent=67 // pred_region
          %s719 = sand.u32 %s31, 1
          %s720 = scalar_lea.sflag [#allocation7], %s719
          %s721 = sand.u32 %s263, 1
          %s722 = smul.addr %s721, 8
          %s723 = scalar_lea.vmem [#allocation8], %s722
          %724 = dma.done %s720, 128
        $region80: #{tpu_custom_call.1} parent=67 // pred_fallthru
          _
      $region68: #{tpu_custom_call.1} parent=5 // pred_fallthru
        _
    $region6: #{tpu_custom_call.1} parent=1 // loop_footer
      %s29 = sadd.s32 1, %s25
    $region7: #{tpu_custom_call.1} parent=1 // loop_footer_branch
      %24 = sbr.rel target = $region3
    $region8: #{tpu_custom_call.1} parent=1 // loop_exit
      _
    %725 = vsyncpa [#allocation3], 1
    %s726 = scalar_lea.sflag [#allocation3], 1
    %727 = vsyncpa %s726, 1
    %728 = vsyncpa [#allocation4], 1
    %s729 = scalar_lea.sflag [#allocation4], 1
    %730 = vsyncpa %s729, 1
    %731 = vsyncpa [#allocation7], 1
    %s732 = scalar_lea.sflag [#allocation7], 1
    %733 = vsyncpa %s732, 1

</llo_original>
